<compile_context>
chip_gen: v7x
topology: tpu7x:2x2x1
jax: 0.10.0
libtpu: 0.0.40
codegen_flags: <defaults>
</compile_context>

<pallas_src>
import functools

import jax
import jax.numpy as jnp
from jax.experimental import pallas as pl
from jax.experimental.pallas import tpu as pltpu

H1, H2, H3 = 256, 128, 1


def _mlp_kernel(x_ref, w1_ref, c1_ref, w2_ref, c2_ref, w3_ref, b3_ref, o_ref):
    # ---- fc1 (+ folded bn1) + relu ----
    # x streamed as f32 from HBM, cast to bf16 here (halves x HBM traffic vs.
    # a separate wrapper-side cast pass).
    x = x_ref[...].astype(jnp.bfloat16)                      # (BM, D)
    h1 = jnp.dot(x, w1_ref[...], preferred_element_type=jnp.float32)
    h1 = jnp.maximum(h1 + c1_ref[...], 0.0)                  # (BM, 256) f32
    # (dropout: identity in eval)

    # ---- fc2 (+ folded bn2) + relu ----
    h2 = jnp.dot(h1.astype(jnp.bfloat16), w2_ref[...],
                 preferred_element_type=jnp.float32)
    h2 = jnp.maximum(h2 + c2_ref[...], 0.0)                  # (BM, 128) f32
    # (dropout: identity in eval)

    # ---- fc3 as VPU multiply + XLU row reduction (N=1 output, skip MXU) ----
    out = jnp.sum(h2 * w3_ref[...], axis=-1) + b3_ref[0, 0]  # (BM,)
    # Lane-dense store: (BM,) -> (1, 1, BM).  The sublane->lane relayout rides
    # the XLU, which has slack here.
    o_ref[...] = out.reshape(o_ref.shape).astype(o_ref.dtype)


def _round_up(n, m):
    return -(-n // m) * m


def _pick_block_m(batch):
    """Multiple of 128, capped at 512; >=2 grid steps when batch > 128."""
    if batch <= 128:
        return 128
    return min(_round_up(-(-batch // 2), 128), 512)


@functools.partial(jax.jit, static_argnames=("block_m",))
def _mlp_forward_impl(x, params, block_m):
    B, D = x.shape
    num_tiles = pl.cdiv(B, block_m)

    # ---- fold BatchNorm (eval) + bias into the linear layers (f32 glue) ----
    w1 = (params["w1"] * params["s1"]).astype(jnp.bfloat16)       # (D, 256)
    c1 = params["b1"] * params["s1"] + params["t1"]               # (1, 256) f32
    w2 = (params["w2"] * params["s2"]).astype(jnp.bfloat16)       # (256, 128)
    c2 = params["b2"] * params["s2"] + params["t2"]               # (1, 128) f32
    w3_row = params["w3"].reshape(1, H2).astype(jnp.float32)      # (1, 128)
    b3 = params["b3"].reshape(1, 1).astype(jnp.float32)           # (1, 1)

    # Weights / fused biases: whole-array VMEM residents (constant every grid
    # step -> no double buffering); only the x tile and output are pipelined.
    vmem = pl.BlockSpec(memory_space=pltpu.MemorySpace.VMEM)
    smem = pl.BlockSpec(memory_space=pltpu.MemorySpace.SMEM)

    out = pl.pallas_call(
        _mlp_kernel,
        # Lane-dense output layout: one (1, block_m) slab per grid step.
        out_shape=jax.ShapeDtypeStruct((num_tiles, 1, block_m), jnp.float32),
        grid_spec=pltpu.PrefetchScalarGridSpec(
            num_scalar_prefetch=0,
            grid=(num_tiles,),
            in_specs=[
                pl.BlockSpec((block_m, D), lambda i: (i, 0)),  # x tile, f32
                vmem,   # w1 (D, 256) bf16
                vmem,   # c1 (1, 256) f32
                vmem,   # w2 (256, 128) bf16
                vmem,   # c2 (1, 128) f32
                vmem,   # w3 row (1, 128) f32
                smem,   # b3 (1, 1) f32 scalar
            ],
            out_specs=pl.BlockSpec((1, 1, block_m), lambda i: (i, 0, 0)),
        ),
        compiler_params=pltpu.CompilerParams(
            dimension_semantics=("parallel",),
            # Explicit scoped-VMEM budget: above v5e's 16 MiB default, well
            # within v7x's 64 MiB physical.  Footprint here is tiny
            # (w1 = D*256*2 B resident + 2x double-buffered x tiles).
            vmem_limit_bytes=32 * 1024 * 1024,
        ),
        # NOTE: for very large input_dim, w1 (D*256*2 B) no longer fits as a
        # VMEM resident (threshold ~halves on v7x's 64 MiB VMEM vs v6e); K-tile
        # fc1 with a reduction grid axis in that regime.
    )(x, w1, c1, w2, c2, w3_row, b3)

    # (num_tiles, 1, block_m) -> (num_tiles*block_m, 1); drop padded tail rows.
    return out.reshape(num_tiles * block_m, 1)[:B]


def mlp_forward(x, params, block_m=None):
    """x: (B, input_dim) float32.  params: dict from init_params()."""
    if block_m is None:
        block_m = _pick_block_m(x.shape[0])
    # Multiple of 128: lane-dense output width and >= bf16 (16, 128) min tile.
    assert block_m % 128 == 0
    return _mlp_forward_impl(x, params, block_m)


def init_params(key, input_dim):
    """Deterministic parameter init matching the PyTorch module's shapes."""
    ks = jax.random.split(key, 6)

    def linear(kw, kb, fan_in, fan_out):
        bound = 1.0 / jnp.sqrt(fan_in)
        w = jax.random.uniform(kw, (fan_in, fan_out), jnp.float32, -bound, bound)
        b = jax.random.uniform(kb, (1, fan_out), jnp.float32, -bound, bound)
        return w, b

    w1, b1 = linear(ks[0], ks[1], input_dim, H1)
    w2, b2 = linear(ks[2], ks[3], H1, H2)
    w3, b3 = linear(ks[4], ks[5], H2, H3)

    eps = 1e-5

    def fold_bn(n):
        # PyTorch BatchNorm1d defaults: gamma=1, beta=0, mean=0, var=1.
        gamma = jnp.ones((1, n), jnp.float32)
        beta = jnp.zeros((1, n), jnp.float32)
        mean = jnp.zeros((1, n), jnp.float32)
        var = jnp.ones((1, n), jnp.float32)
        scale = gamma / jnp.sqrt(var + eps)
        shift = beta - mean * scale
        return scale, shift

    s1, t1 = fold_bn(H1)
    s2, t2 = fold_bn(H2)

    return dict(w1=w1, b1=b1, s1=s1, t1=t1,
                w2=w2, b2=b2, s2=s2, t2=t2,
                w3=w3, b3=b3)


def mlp_reference(x, p):
    """Pure-JAX (f32) reference of the same eval-mode forward pass."""
    h1 = jnp.maximum((x @ p["w1"] + p["b1"]) * p["s1"] + p["t1"], 0.0)
    h2 = jnp.maximum((h1 @ p["w2"] + p["b2"]) * p["s2"] + p["t2"], 0.0)
    return h2 @ p["w3"] + p["b3"]


if __name__ == "__main__":
    key = jax.random.PRNGKey(0)
    k_x, k_p, k_x2 = jax.random.split(key, 3)

    batch, input_dim = 8, 32
    params = init_params(k_p, input_dim)

    # Small ragged batch -> single 128-row tile with a partial block.
    x = jax.random.normal(k_x, (batch, input_dim), jnp.float32)
    out = jax.block_until_ready(mlp_forward(x, params))
    ref = mlp_reference(x, params)
    assert out.shape == (batch, 1)
    assert jnp.allclose(out, ref, atol=2e-2, rtol=2e-2)  # bf16 matmul operands

    # Multi-tile + ragged check (2 grid steps, partial last tile).
    x2 = jax.random.normal(k_x2, (300, input_dim), jnp.float32)
    out2 = jax.block_until_ready(mlp_forward(x2, params))
    ref2 = mlp_reference(x2, params)
    assert out2.shape == (300, 1)
    assert jnp.allclose(out2, ref2, atol=2e-2, rtol=2e-2)

    print("KERNEL_OK")
</pallas_src>

<mosaic_0001>
module attributes {stable_mosaic.version = 11 : i64} {
  func.func @_mlp_kernel(%arg0: i32, %arg1: memref<128x32xf32, #tpu.memory_space<vmem>>, %arg2: memref<32x256xbf16, #tpu.memory_space<vmem>>, %arg3: memref<1x256xf32, #tpu.memory_space<vmem>>, %arg4: memref<256x128xbf16, #tpu.memory_space<vmem>>, %arg5: memref<1x128xf32, #tpu.memory_space<vmem>>, %arg6: memref<1x128xf32, #tpu.memory_space<vmem>>, %arg7: memref<1x1xf32, #tpu.memory_space<smem>>, %arg8: memref<1x1x128xf32, #tpu.memory_space<vmem>>) attributes {dimension_semantics = [#tpu.dimension_semantics<parallel>], iteration_bounds = array<i64: 1>, scalar_prefetch = 0 : i64, scratch_operands = 0 : i64, tpu.core_type = #tpu.core_type<tc>, window_params = [{transform_indices = @transform_0, window_bounds = array<i64: 128, 32>}, {pipeline_mode = #tpu.pipeline_mode<synchronous>, transform_indices = @transform_1, window_bounds = array<i64: 32, 256>}, {pipeline_mode = #tpu.pipeline_mode<synchronous>, transform_indices = @transform_2, window_bounds = array<i64: 1, 256>}, {pipeline_mode = #tpu.pipeline_mode<synchronous>, transform_indices = @transform_3, window_bounds = array<i64: 256, 128>}, {pipeline_mode = #tpu.pipeline_mode<synchronous>, transform_indices = @transform_4, window_bounds = array<i64: 1, 128>}, {pipeline_mode = #tpu.pipeline_mode<synchronous>, transform_indices = @transform_5, window_bounds = array<i64: 1, 128>}, {transform_indices = @transform_6, window_bounds = array<i64: 1, 1>}, {transform_indices = @transform_7, window_bounds = array<i64: 1, 1, 128>}]} {
    %c0 = arith.constant 0 : index
    %c0_0 = arith.constant 0 : index
    %0 = vector.load %arg1[%c0, %c0_0] : memref<128x32xf32, #tpu.memory_space<vmem>>, vector<128x32xf32>
    %1 = arith.truncf %0 : vector<128x32xf32> to vector<128x32xbf16>
    %c0_1 = arith.constant 0 : index
    %c0_2 = arith.constant 0 : index
    %2 = vector.load %arg2[%c0_1, %c0_2] : memref<32x256xbf16, #tpu.memory_space<vmem>>, vector<32x256xbf16>
    %cst = arith.constant dense<0.000000e+00> : vector<128x256xf32>
    %3 = tpu.matmul %1, %2, %cst {dimension_numbers = #tpu.dot_dimension_numbers<[1], [0], [0], [1], [0, 0, 1, 1], [], []>} : vector<128x32xbf16>, vector<32x256xbf16>, vector<128x256xf32> -> vector<128x256xf32>
    %c0_3 = arith.constant 0 : index
    %c0_4 = arith.constant 0 : index
    %4 = vector.load %arg3[%c0_3, %c0_4] : memref<1x256xf32, #tpu.memory_space<vmem>>, vector<1x256xf32>
    %5 = vector.broadcast %4 : vector<1x256xf32> to vector<128x256xf32>
    %6 = arith.addf %3, %5 : vector<128x256xf32>
    %cst_5 = arith.constant 0.000000e+00 : f32
    %7 = vector.broadcast %cst_5 : f32 to vector<128x256xf32>
    %8 = arith.maximumf %6, %7 : vector<128x256xf32>
    %9 = arith.truncf %8 : vector<128x256xf32> to vector<128x256xbf16>
    %c0_6 = arith.constant 0 : index
    %c0_7 = arith.constant 0 : index
    %10 = vector.load %arg4[%c0_6, %c0_7] : memref<256x128xbf16, #tpu.memory_space<vmem>>, vector<256x128xbf16>
    %cst_8 = arith.constant dense<0.000000e+00> : vector<128x128xf32>
    %11 = tpu.matmul %9, %10, %cst_8 {dimension_numbers = #tpu.dot_dimension_numbers<[1], [0], [0], [1], [0, 0, 1, 1], [], []>} : vector<128x256xbf16>, vector<256x128xbf16>, vector<128x128xf32> -> vector<128x128xf32>
    %c0_9 = arith.constant 0 : index
    %c0_10 = arith.constant 0 : index
    %12 = vector.load %arg5[%c0_9, %c0_10] : memref<1x128xf32, #tpu.memory_space<vmem>>, vector<1x128xf32>
    %13 = vector.broadcast %12 : vector<1x128xf32> to vector<128x128xf32>
    %14 = arith.addf %11, %13 : vector<128x128xf32>
    %cst_11 = arith.constant 0.000000e+00 : f32
    %15 = vector.broadcast %cst_11 : f32 to vector<128x128xf32>
    %16 = arith.maximumf %14, %15 : vector<128x128xf32>
    %c0_12 = arith.constant 0 : index
    %c0_13 = arith.constant 0 : index
    %17 = vector.load %arg6[%c0_12, %c0_13] : memref<1x128xf32, #tpu.memory_space<vmem>>, vector<1x128xf32>
    %18 = vector.broadcast %17 : vector<1x128xf32> to vector<128x128xf32>
    %19 = arith.mulf %16, %18 : vector<128x128xf32>
    %cst_14 = arith.constant dense<0.000000e+00> : vector<128xf32>
    %20 = vector.multi_reduction <add>, %19, %cst_14 [1] : vector<128x128xf32> to vector<128xf32>
    %c0_15 = arith.constant 0 : index
    %c0_16 = arith.constant 0 : index
    %21 = memref.load %arg7[%c0_15, %c0_16] : memref<1x1xf32, #tpu.memory_space<smem>>
    %22 = vector.broadcast %21 : f32 to vector<128xf32>
    %23 = arith.addf %20, %22 : vector<128xf32>
    %24 = vector.shape_cast %23 : vector<128xf32> to vector<1x1x128xf32>
    %c0_17 = arith.constant 0 : index
    %c0_18 = arith.constant 0 : index
    %c0_19 = arith.constant 0 : index
    %25 = vector.load %arg8[%c0_17, %c0_18, %c0_19] : memref<1x1x128xf32, #tpu.memory_space<vmem>>, vector<1x1x128xf32>
    tpu.vector_store %arg8[%c0_17, %c0_18, %c0_19], %24 {strides = array<i32>} : memref<1x1x128xf32, #tpu.memory_space<vmem>>, vector<1x1x128xf32>,
    return
  }
  func.func @transform_0(%arg0: i32) -> (i32, i32) {
    %c0_i32 = arith.constant 0 : i32
    %c0_i32_0 = arith.constant 0 : i32
    return %arg0, %c0_i32 : i32, i32
  }
  func.func @transform_1(%arg0: i32) -> (i32, i32) {
    %c0_i32 = arith.constant 0 : i32
    %c0_i32_0 = arith.constant 0 : i32
    %c0_i32_1 = arith.constant 0 : i32
    return %c0_i32, %c0_i32_0 : i32, i32
  }
  func.func @transform_2(%arg0: i32) -> (i32, i32) {
    %c0_i32 = arith.constant 0 : i32
    %c0_i32_0 = arith.constant 0 : i32
    %c0_i32_1 = arith.constant 0 : i32
    return %c0_i32, %c0_i32_0 : i32, i32
  }
  func.func @transform_3(%arg0: i32) -> (i32, i32) {
    %c0_i32 = arith.constant 0 : i32
    %c0_i32_0 = arith.constant 0 : i32
    %c0_i32_1 = arith.constant 0 : i32
    return %c0_i32, %c0_i32_0 : i32, i32
  }
  func.func @transform_4(%arg0: i32) -> (i32, i32) {
    %c0_i32 = arith.constant 0 : i32
    %c0_i32_0 = arith.constant 0 : i32
    %c0_i32_1 = arith.constant 0 : i32
    return %c0_i32, %c0_i32_0 : i32, i32
  }
  func.func @transform_5(%arg0: i32) -> (i32, i32) {
    %c0_i32 = arith.constant 0 : i32
    %c0_i32_0 = arith.constant 0 : i32
    %c0_i32_1 = arith.constant 0 : i32
    return %c0_i32, %c0_i32_0 : i32, i32
  }
  func.func @transform_6(%arg0: i32) -> (i32, i32) {
    %c0_i32 = arith.constant 0 : i32
    %c0_i32_0 = arith.constant 0 : i32
    %c0_i32_1 = arith.constant 0 : i32
    return %c0_i32, %c0_i32_0 : i32, i32
  }
  func.func @transform_7(%arg0: i32) -> (i32, i32, i32) {
    %c0_i32 = arith.constant 0 : i32
    %c0_i32_0 = arith.constant 0 : i32
    %c0_i32_1 = arith.constant 0 : i32
    return %arg0, %c0_i32, %c0_i32_0 : i32, i32, i32
  }
}

</mosaic_0001>

<llo_original>
// kernel: _mlp_forward_impl.1
$region0: #{_mlp_forward_impl.1}
  #allocation0 [shape = 'u32[]', space=smem, size = 0x4, offset = 0x4, fixed_abs, tag = 'smem constant byte address 0x4 - core index']
  #allocation1 [shape = 'u32[144,128]{1,0:T(1,128)}', space=vmem, size = 0x12000, scoped, tag = 'internal scratch']
  #allocation2 [shape = 'f32[1,1]{1,0:T(1,128)S(6)}', space=smem, size = 0x200, scoped, tag = 'scoped memory for _mlp_forward_impl.1']
  %s0 = inlined_call_operand.vmem [shape: f32[8,32], index: 0, kind: input, shape index: {}]
  %s1 = inlined_call_operand.vmem [shape: bf16[32,256], index: 1, kind: input, shape index: {}]
  %s2 = inlined_call_operand.vmem [shape: f32[1,256], index: 2, kind: input, shape index: {}]
  %s3 = inlined_call_operand.vmem [shape: bf16[256,128], index: 3, kind: input, shape index: {}]
  %s4 = inlined_call_operand.vmem [shape: f32[1,128], index: 4, kind: input, shape index: {}]
  %s5 = inlined_call_operand.vmem [shape: f32[1,128], index: 5, kind: input, shape index: {}]
  %s6 = inlined_call_operand.<no memory space> [shape: f32[1,1], index: 6, kind: input, shape index: {}]
  %s7 = inlined_call_operand.vmem [shape: f32[1,1,128], index: 7, kind: output, shape index: {}]
  %s8 = sld [smem:[#allocation0]]
  $region38: #{_mlp_forward_impl.1} parent=0
    _
  %s10 = ssub.s32 1, %s8
  %s11 = scalar_select 0, %s10, %s8
  %12 = sst [smem:[#allocation2]] %s6
  // Predicated region
  $region2: #{_mlp_forward_impl.1} parent=0 // pred_check
    _
  $region3: #{_mlp_forward_impl.1} parent=0 // pred_check_branch
    %14 = sbr.rel (0) target = $region5
  $region4: #{_mlp_forward_impl.1} parent=0 // pred_region
    _
  $region5: #{_mlp_forward_impl.1} parent=0 // pred_fallthru
    _
  // Predicated region
  $region6: #{_mlp_forward_impl.1} parent=0 // pred_check
    _
  $region7: #{_mlp_forward_impl.1} parent=0 // pred_check_branch
    %16 = sbr.rel (0) target = $region9
  $region8: #{_mlp_forward_impl.1} parent=0 // pred_region
    _
  $region9: #{_mlp_forward_impl.1} parent=0 // pred_fallthru
    _
  // Predicated region
  $region10: #{_mlp_forward_impl.1} parent=0 // pred_check
    _
  $region11: #{_mlp_forward_impl.1} parent=0 // pred_check_branch
    %18 = sbr.rel (0) target = $region13
  $region12: #{_mlp_forward_impl.1} parent=0 // pred_region
    _
  $region13: #{_mlp_forward_impl.1} parent=0 // pred_fallthru
    _
  // Predicated region
  $region14: #{_mlp_forward_impl.1} parent=0 // pred_check
    _
  $region15: #{_mlp_forward_impl.1} parent=0 // pred_check_branch
    %20 = sbr.rel (0) target = $region17
  $region16: #{_mlp_forward_impl.1} parent=0 // pred_region
    _
  $region17: #{_mlp_forward_impl.1} parent=0 // pred_fallthru
    _
  // Predicated region
  $region18: #{_mlp_forward_impl.1} parent=0 // pred_check
    _
  $region19: #{_mlp_forward_impl.1} parent=0 // pred_check_branch
    %22 = sbr.rel (0) target = $region21
  $region20: #{_mlp_forward_impl.1} parent=0 // pred_region
    _
  $region21: #{_mlp_forward_impl.1} parent=0 // pred_fallthru
    _
  // Predicated region
  $region22: #{_mlp_forward_impl.1} parent=0 // pred_check
    _
  $region23: #{_mlp_forward_impl.1} parent=0 // pred_check_branch
    %24 = sbr.rel (0) target = $region25
  $region24: #{_mlp_forward_impl.1} parent=0 // pred_region
    _
  $region25: #{_mlp_forward_impl.1} parent=0 // pred_fallthru
    _
  // Predicated region
  $region26: #{_mlp_forward_impl.1} parent=0 // pred_check
    _
  $region27: #{_mlp_forward_impl.1} parent=0 // pred_check_branch
    %26 = sbr.rel (0) target = $region29
  $region28: #{_mlp_forward_impl.1} parent=0 // pred_region
    _
  $region29: #{_mlp_forward_impl.1} parent=0 // pred_fallthru
    _
  %v28 = vld [vmem:[%s0] sm:$0xff]
  %v29 = vld [vmem:[%s0 + $0x8] sm:$0xff]
  %v30 = vld [vmem:[%s0 + $0x10] sm:$0xff]
  %v31 = vld [vmem:[%s0 + $0x18] sm:$0xff]
  %v32 = vld [vmem:[%s0 + $0x20] sm:$0xff]
  %v33 = vld [vmem:[%s0 + $0x28] sm:$0xff]
  %v34 = vld [vmem:[%s0 + $0x30] sm:$0xff]
  %v35 = vld [vmem:[%s0 + $0x38] sm:$0xff]
  %v36 = vld [vmem:[%s0 + $0x40] sm:$0xff]
  %v37 = vld [vmem:[%s0 + $0x48] sm:$0xff]
  %v38 = vld [vmem:[%s0 + $0x50] sm:$0xff]
  %v39 = vld [vmem:[%s0 + $0x58] sm:$0xff]
  %v40 = vld [vmem:[%s0 + $0x60] sm:$0xff]
  %v41 = vld [vmem:[%s0 + $0x68] sm:$0xff]
  %v42 = vld [vmem:[%s0 + $0x70] sm:$0xff]
  %v43 = vld [vmem:[%s0 + $0x78] sm:$0xff]
  %v44 = vpack.c.bf16 %v29, %v28
  %v45 = vpack.c.bf16 %v31, %v30
  %v46 = vpack.c.bf16 %v33, %v32
  %v47 = vpack.c.bf16 %v35, %v34
  %v48 = vpack.c.bf16 %v37, %v36
  %v49 = vpack.c.bf16 %v39, %v38
  %v50 = vpack.c.bf16 %v41, %v40
  %v51 = vpack.c.bf16 %v43, %v42
  %v52 = vld [vmem:[%s1] sm:$0xff]
  %v53 = vld [vmem:[%s1 + $0x8] sm:$0xff]
  %v54 = vld [vmem:[%s1 + $0x10] sm:$0xff]
  %v55 = vld [vmem:[%s1 + $0x18] sm:$0xff]
  %v56 = vld [vmem:[%s2] sm:$0x3]
  %v58 = vlaneseq
  %v59 = vshrl.u32 %v58, 7
  %v60 = vsub.s32 0, %v59
  %v61 = vrot.slane %v56, %v60
  %v62 = vlaneseq
  %v63 = vshrl.u32 %v62, 7
  %v64 = vsub.s32 1, %v63
  %v65 = vrot.slane %v56, %v64
  %v72 = vunpack.c.l.b16 %v52
  %v73 = vunpack.c.h.b16 %v52
  %v74 = vunpack.c.l.b16 %v53
  %v75 = vunpack.c.h.b16 %v53
  %v76 = vunpack.c.l.b16 %v54
  %v77 = vunpack.c.h.b16 %v54
  %v78 = vunpack.c.l.b16 %v55
  %v79 = vunpack.c.h.b16 %v55
  %v80 = vpack.c.b16 %v74, %v72
  %v81 = vpack.c.b16 %v75, %v73
  %v82 = vpack.c.b16 %v78, %v76
  %v83 = vpack.c.b16 %v79, %v77
  %vm88 = vcmask 261120
  %v90 = vsel %vm88, %v44, 0
  %v93 = vsel %vm88, %v45, 0
  %v96 = vsel %vm88, %v46, 0
  %v99 = vsel %vm88, %v47, 0
  %v102 = vsel %vm88, %v48, 0
  %v105 = vsel %vm88, %v49, 0
  %v108 = vsel %vm88, %v50, 0
  %v111 = vsel %vm88, %v51, 0
  %113 = vmatprep.subr.bf16.mxu0 %v81
  %114 = vmatpush1.bf16.msra.mxu0 %v80
  %115 = vmatprep.subr.bf16.mxu0 %v83
  %116 = vmatpush1.bf16.msra.mxu0 %v82
  %117 = vmatprep.subr.bf16.mxu0 0
  %118 = vmatpush1.bf16.msra.mxu0 0
  %119 = vmatprep.subr.bf16.mxu0 0
  %120 = vmatpush1.bf16.msra.mxu0 0
  %121 = vmatprep.subr.bf16.mxu0 0
  %122 = vmatpush1.bf16.msra.mxu0 0
  %123 = vmatprep.subr.bf16.mxu0 0
  %124 = vmatpush1.bf16.msra.mxu0 0
  %125 = vmatprep.subr.bf16.mxu0 0
  %126 = vmatpush1.bf16.msra.mxu0 0
  %127 = vmatprep.subr.bf16.mxu0 0
  %128 = vmatpush1.bf16.msra.mxu0 0
  %129 = vmatprep.subr.bf16.mxu0 0
  %130 = vmatpush1.bf16.msra.mxu0 0
  %131 = vmatprep.subr.bf16.mxu0 0
  %132 = vmatpush1.bf16.msra.mxu0 0
  %133 = vmatprep.subr.bf16.mxu0 0
  %134 = vmatpush1.bf16.msra.mxu0 0
  %135 = vmatprep.subr.bf16.mxu0 0
  %136 = vmatpush1.bf16.msra.mxu0 0
  %137 = vmatprep.subr.bf16.mxu0 0
  %138 = vmatpush1.bf16.msra.mxu0 0
  %139 = vmatprep.subr.bf16.mxu0 0
  %140 = vmatpush1.bf16.msra.mxu0 0
  %141 = vmatprep.subr.bf16.mxu0 0
  %142 = vmatpush1.bf16.msra.mxu0 0
  %143 = vmatprep.subr.bf16.mxu0 0
  %144 = vmatpush1.bf16.msra.mxu0 0
  %145 = vmatprep.mubr.bf16.mxu0 0
  %146 = vmatmul.mubr.bf16.gmra.mrb[0].mxu0 %v90
  %v147 = vpop.f32.mrb[0].mxu0
  %v148 = vadd.f32 %v61, %v147
  %v149 = vpop.f32.mrb[0].mxu0
  %v150 = vadd.f32 %v65, %v149
  %v151 = vpop.f32.mrb[0].mxu0
  %v152 = vadd.f32 %v61, %v151
  %v153 = vpop.f32.mrb[0].mxu0
  %v154 = vadd.f32 %v65, %v153
  %155 = vmatprep.mubr.bf16.mxu0 0
  %156 = vmatmul.mubr.bf16.gmra.mrb[0].mxu0 %v93
  %v157 = vpop.f32.mrb[0].mxu0
  %v158 = vadd.f32 %v61, %v157
  %v159 = vpop.f32.mrb[0].mxu0
  %v160 = vadd.f32 %v65, %v159
  %v161 = vpop.f32.mrb[0].mxu0
  %v162 = vadd.f32 %v61, %v161
  %v163 = vpop.f32.mrb[0].mxu0
  %v164 = vadd.f32 %v65, %v163
  %165 = vmatprep.mubr.bf16.mxu0 0
  %166 = vmatmul.mubr.bf16.gmra.mrb[0].mxu0 %v96
  %v167 = vpop.f32.mrb[0].mxu0
  %v168 = vadd.f32 %v61, %v167
  %v169 = vpop.f32.mrb[0].mxu0
  %v170 = vadd.f32 %v65, %v169
  %v171 = vpop.f32.mrb[0].mxu0
  %v172 = vadd.f32 %v61, %v171
  %v173 = vpop.f32.mrb[0].mxu0
  %v174 = vadd.f32 %v65, %v173
  %175 = vmatprep.mubr.bf16.mxu0 0
  %176 = vmatmul.mubr.bf16.gmra.mrb[0].mxu0 %v99
  %v177 = vpop.f32.mrb[0].mxu0
  %v178 = vadd.f32 %v61, %v177
  %v179 = vpop.f32.mrb[0].mxu0
  %v180 = vadd.f32 %v65, %v179
  %v181 = vpop.f32.mrb[0].mxu0
  %v182 = vadd.f32 %v61, %v181
  %v183 = vpop.f32.mrb[0].mxu0
  %v184 = vadd.f32 %v65, %v183
  %185 = vmatprep.mubr.bf16.mxu0 0
  %186 = vmatmul.mubr.bf16.gmra.mrb[0].mxu0 %v102
  %v187 = vpop.f32.mrb[0].mxu0
  %v188 = vadd.f32 %v61, %v187
  %v189 = vpop.f32.mrb[0].mxu0
  %v190 = vadd.f32 %v65, %v189
  %v191 = vpop.f32.mrb[0].mxu0
  %v192 = vadd.f32 %v61, %v191
  %v193 = vpop.f32.mrb[0].mxu0
  %v194 = vadd.f32 %v65, %v193
  %195 = vmatprep.mubr.bf16.mxu0 0
  %196 = vmatmul.mubr.bf16.gmra.mrb[0].mxu0 %v105
  %v197 = vpop.f32.mrb[0].mxu0
  %v198 = vadd.f32 %v61, %v197
  %v199 = vpop.f32.mrb[0].mxu0
  %v200 = vadd.f32 %v65, %v199
  %v201 = vpop.f32.mrb[0].mxu0
  %v202 = vadd.f32 %v61, %v201
  %v203 = vpop.f32.mrb[0].mxu0
  %v204 = vadd.f32 %v65, %v203
  %205 = vmatprep.mubr.bf16.mxu0 0
  %206 = vmatmul.mubr.bf16.gmra.mrb[0].mxu0 %v108
  %v207 = vpop.f32.mrb[0].mxu0
  %v208 = vadd.f32 %v61, %v207
  %v209 = vpop.f32.mrb[0].mxu0
  %v210 = vadd.f32 %v65, %v209
  %v211 = vpop.f32.mrb[0].mxu0
  %v212 = vadd.f32 %v61, %v211
  %v213 = vpop.f32.mrb[0].mxu0
  %v214 = vadd.f32 %v65, %v213
  %215 = vmatprep.mubr.bf16.mxu0 0
  %216 = vmatmul.mubr.bf16.gmra.mrb[0].mxu0 %v111
  %v217 = vpop.f32.mrb[0].mxu0
  %v218 = vadd.f32 %v61, %v217
  %v219 = vpop.f32.mrb[0].mxu0
  %v220 = vadd.f32 %v65, %v219
  %v221 = vpop.f32.mrb[0].mxu0
  %v222 = vadd.f32 %v61, %v221
  %v223 = vpop.f32.mrb[0].mxu0
  %v224 = vadd.f32 %v65, %v223
  %225 = vdwg.mxu0
  %v226 = vmax.f32 %v148, 0.0
  %v227 = vmax.f32 %v150, 0.0
  %v228 = vmax.f32 %v152, 0.0
  %v229 = vmax.f32 %v154, 0.0
  %v230 = vmax.f32 %v158, 0.0
  %v231 = vmax.f32 %v160, 0.0
  %v232 = vmax.f32 %v162, 0.0
  %v233 = vmax.f32 %v164, 0.0
  %v234 = vmax.f32 %v168, 0.0
  %v235 = vmax.f32 %v170, 0.0
  %v236 = vmax.f32 %v172, 0.0
  %v237 = vmax.f32 %v174, 0.0
  %v238 = vmax.f32 %v178, 0.0
  %v239 = vmax.f32 %v180, 0.0
  %v240 = vmax.f32 %v182, 0.0
  %v241 = vmax.f32 %v184, 0.0
  %v242 = vmax.f32 %v188, 0.0
  %v243 = vmax.f32 %v190, 0.0
  %v244 = vmax.f32 %v192, 0.0
  %v245 = vmax.f32 %v194, 0.0
  %v246 = vmax.f32 %v198, 0.0
  %v247 = vmax.f32 %v200, 0.0
  %v248 = vmax.f32 %v202, 0.0
  %v249 = vmax.f32 %v204, 0.0
  %v250 = vmax.f32 %v208, 0.0
  %v251 = vmax.f32 %v210, 0.0
  %v252 = vmax.f32 %v212, 0.0
  %v253 = vmax.f32 %v214, 0.0
  %v254 = vmax.f32 %v218, 0.0
  %v255 = vmax.f32 %v220, 0.0
  %v256 = vmax.f32 %v222, 0.0
  %v257 = vmax.f32 %v224, 0.0
  %v258 = vpack.c.bf16 %v228, %v226
  %v259 = vpack.c.bf16 %v229, %v227
  %v260 = vpack.c.bf16 %v232, %v230
  %v261 = vpack.c.bf16 %v233, %v231
  %v262 = vpack.c.bf16 %v236, %v234
  %v263 = vpack.c.bf16 %v237, %v235
  %v264 = vpack.c.bf16 %v240, %v238
  %v265 = vpack.c.bf16 %v241, %v239
  %v266 = vpack.c.bf16 %v244, %v242
  %v267 = vpack.c.bf16 %v245, %v243
  %v268 = vpack.c.bf16 %v248, %v246
  %v269 = vpack.c.bf16 %v249, %v247
  %v270 = vpack.c.bf16 %v252, %v250
  %v271 = vpack.c.bf16 %v253, %v251
  %v272 = vpack.c.bf16 %v256, %v254
  %v273 = vpack.c.bf16 %v257, %v255
  %v274 = vld [vmem:[%s3] sm:$0xf]
  %v275 = vld [vmem:[%s3 + $0x4] sm:$0xf]
  %v276 = vld [vmem:[%s3 + $0x8] sm:$0xf]
  %v277 = vld [vmem:[%s3 + $0xc] sm:$0xf]
  %v278 = vld [vmem:[%s3 + $0x10] sm:$0xf]
  %v279 = vld [vmem:[%s3 + $0x14] sm:$0xf]
  %v280 = vld [vmem:[%s3 + $0x18] sm:$0xf]
  %v281 = vld [vmem:[%s3 + $0x1c] sm:$0xf]
  %v282 = vld [vmem:[%s3 + $0x20] sm:$0xf]
  %v283 = vld [vmem:[%s3 + $0x24] sm:$0xf]
  %v284 = vld [vmem:[%s3 + $0x28] sm:$0xf]
  %v285 = vld [vmem:[%s3 + $0x2c] sm:$0xf]
  %v286 = vld [vmem:[%s3 + $0x30] sm:$0xf]
  %v287 = vld [vmem:[%s3 + $0x34] sm:$0xf]
  %v288 = vld [vmem:[%s3 + $0x38] sm:$0xf]
  %v289 = vld [vmem:[%s3 + $0x3c] sm:$0xf]
  %v290 = vld [vmem:[%s3 + $0x40] sm:$0xf]
  %v291 = vld [vmem:[%s3 + $0x44] sm:$0xf]
  %v292 = vld [vmem:[%s3 + $0x48] sm:$0xf]
  %v293 = vld [vmem:[%s3 + $0x4c] sm:$0xf]
  %v294 = vld [vmem:[%s3 + $0x50] sm:$0xf]
  %v295 = vld [vmem:[%s3 + $0x54] sm:$0xf]
  %v296 = vld [vmem:[%s3 + $0x58] sm:$0xf]
  %v297 = vld [vmem:[%s3 + $0x5c] sm:$0xf]
  %v298 = vld [vmem:[%s3 + $0x60] sm:$0xf]
  %v299 = vld [vmem:[%s3 + $0x64] sm:$0xf]
  %v300 = vld [vmem:[%s3 + $0x68] sm:$0xf]
  %v301 = vld [vmem:[%s3 + $0x6c] sm:$0xf]
  %v302 = vld [vmem:[%s3 + $0x70] sm:$0xf]
  %v303 = vld [vmem:[%s3 + $0x74] sm:$0xf]
  %v304 = vld [vmem:[%s3 + $0x78] sm:$0xf]
  %v305 = vld [vmem:[%s3 + $0x7c] sm:$0xf]
  %v306 = vld [vmem:[%s4] sm:$0x1]
  %v308 = vlaneseq
  %v309 = vshrl.u32 %v308, 7
  %v310 = vsub.s32 0, %v309
  %v311 = vrot.slane %v306, %v310
  %v345 = vunpack.c.l.b16 %v274
  %v346 = vunpack.c.l.b16 %v275
  %v347 = vunpack.c.l.b16 %v276
  %v348 = vunpack.c.l.b16 %v277
  %v349 = vunpack.c.l.b16 %v278
  %v350 = vunpack.c.l.b16 %v279
  %v351 = vunpack.c.l.b16 %v280
  %v352 = vunpack.c.l.b16 %v281
  %v353 = vunpack.c.l.b16 %v282
  %v354 = vunpack.c.l.b16 %v283
  %v355 = vunpack.c.l.b16 %v284
  %v356 = vunpack.c.l.b16 %v285
  %v357 = vunpack.c.l.b16 %v286
  %v358 = vunpack.c.l.b16 %v287
  %v359 = vunpack.c.l.b16 %v288
  %v360 = vunpack.c.l.b16 %v289
  %v361 = vunpack.c.l.b16 %v290
  %v362 = vunpack.c.l.b16 %v291
  %v363 = vunpack.c.l.b16 %v292
  %v364 = vunpack.c.l.b16 %v293
  %v365 = vunpack.c.l.b16 %v294
  %v366 = vunpack.c.l.b16 %v295
  %v367 = vunpack.c.l.b16 %v296
  %v368 = vunpack.c.l.b16 %v297
  %v369 = vunpack.c.l.b16 %v298
  %v370 = vunpack.c.l.b16 %v299
  %v371 = vunpack.c.l.b16 %v300
  %v372 = vunpack.c.l.b16 %v301
  %v373 = vunpack.c.l.b16 %v302
  %v374 = vunpack.c.l.b16 %v303
  %v375 = vunpack.c.l.b16 %v304
  %v376 = vunpack.c.l.b16 %v305
  %v377 = vpack.c.b16 %v346, %v345
  %v378 = vpack.c.b16 %v348, %v347
  %v379 = vpack.c.b16 %v350, %v349
  %v380 = vpack.c.b16 %v352, %v351
  %v381 = vpack.c.b16 %v354, %v353
  %v382 = vpack.c.b16 %v356, %v355
  %v383 = vpack.c.b16 %v358, %v357
  %v384 = vpack.c.b16 %v360, %v359
  %v385 = vpack.c.b16 %v362, %v361
  %v386 = vpack.c.b16 %v364, %v363
  %v387 = vpack.c.b16 %v366, %v365
  %v388 = vpack.c.b16 %v368, %v367
  %v389 = vpack.c.b16 %v370, %v369
  %v390 = vpack.c.b16 %v372, %v371
  %v391 = vpack.c.b16 %v374, %v373
  %v392 = vpack.c.b16 %v376, %v375
  %409 = vmatprep.subr.bf16.mxu0 0
  %410 = vmatpush1.bf16.msra.mxu0 %v377
  %411 = vmatprep.subr.bf16.mxu0 0
  %412 = vmatpush1.bf16.msra.mxu0 %v378
  %413 = vmatprep.subr.bf16.mxu0 0
  %414 = vmatpush1.bf16.msra.mxu0 %v379
  %415 = vmatprep.subr.bf16.mxu0 0
  %416 = vmatpush1.bf16.msra.mxu0 %v380
  %417 = vmatprep.subr.bf16.mxu0 0
  %418 = vmatpush1.bf16.msra.mxu0 %v381
  %419 = vmatprep.subr.bf16.mxu0 0
  %420 = vmatpush1.bf16.msra.mxu0 %v382
  %421 = vmatprep.subr.bf16.mxu0 0
  %422 = vmatpush1.bf16.msra.mxu0 %v383
  %423 = vmatprep.subr.bf16.mxu0 0
  %424 = vmatpush1.bf16.msra.mxu0 %v384
  %425 = vmatprep.subr.bf16.mxu0 0
  %426 = vmatpush1.bf16.msra.mxu0 %v385
  %427 = vmatprep.subr.bf16.mxu0 0
  %428 = vmatpush1.bf16.msra.mxu0 %v386
  %429 = vmatprep.subr.bf16.mxu0 0
  %430 = vmatpush1.bf16.msra.mxu0 %v387
  %431 = vmatprep.subr.bf16.mxu0 0
  %432 = vmatpush1.bf16.msra.mxu0 %v388
  %433 = vmatprep.subr.bf16.mxu0 0
  %434 = vmatpush1.bf16.msra.mxu0 %v389
  %435 = vmatprep.subr.bf16.mxu0 0
  %436 = vmatpush1.bf16.msra.mxu0 %v390
  %437 = vmatprep.subr.bf16.mxu0 0
  %438 = vmatpush1.bf16.msra.mxu0 %v391
  %439 = vmatprep.subr.bf16.mxu0 0
  %440 = vmatpush1.bf16.msra.mxu0 %v392
  %441 = vmatprep.mubr.bf16.mxu0 %v259
  %442 = vmatmul.mubr.bf16.gmra.mrb[0].mxu0 %v258
  %v443 = vpop.f32.mrb[0].mxu0
  %v444 = vadd.f32 %v311, %v443
  %v445 = vpop.f32.mrb[0].mxu0
  %v446 = vpop.f32.mrb[0].mxu0
  %v447 = vadd.f32 %v311, %v446
  %v448 = vpop.f32.mrb[0].mxu0
  %449 = vmatprep.mubr.bf16.mxu0 %v261
  %450 = vmatmul.mubr.bf16.gmra.mrb[0].mxu0 %v260
  %v451 = vpop.f32.mrb[0].mxu0
  %v452 = vadd.f32 %v311, %v451
  %v453 = vpop.f32.mrb[0].mxu0
  %v454 = vpop.f32.mrb[0].mxu0
  %v455 = vadd.f32 %v311, %v454
  %v456 = vpop.f32.mrb[0].mxu0
  %457 = vmatprep.mubr.bf16.mxu0 %v263
  %458 = vmatmul.mubr.bf16.gmra.mrb[0].mxu0 %v262
  %v459 = vpop.f32.mrb[0].mxu0
  %v460 = vadd.f32 %v311, %v459
  %v461 = vpop.f32.mrb[0].mxu0
  %v462 = vpop.f32.mrb[0].mxu0
  %v463 = vadd.f32 %v311, %v462
  %v464 = vpop.f32.mrb[0].mxu0
  %465 = vmatprep.mubr.bf16.mxu0 %v265
  %466 = vmatmul.mubr.bf16.gmra.mrb[0].mxu0 %v264
  %v467 = vpop.f32.mrb[0].mxu0
  %v468 = vadd.f32 %v311, %v467
  %v469 = vpop.f32.mrb[0].mxu0
  %v470 = vpop.f32.mrb[0].mxu0
  %v471 = vadd.f32 %v311, %v470
  %v472 = vpop.f32.mrb[0].mxu0
  %473 = vmatprep.mubr.bf16.mxu0 %v267
  %474 = vmatmul.mubr.bf16.gmra.mrb[0].mxu0 %v266
  %v475 = vpop.f32.mrb[0].mxu0
  %v476 = vadd.f32 %v311, %v475
  %v477 = vpop.f32.mrb[0].mxu0
  %v478 = vpop.f32.mrb[0].mxu0
  %v479 = vadd.f32 %v311, %v478
  %v480 = vpop.f32.mrb[0].mxu0
  %481 = vmatprep.mubr.bf16.mxu0 %v269
  %482 = vmatmul.mubr.bf16.gmra.mrb[0].mxu0 %v268
  %v483 = vpop.f32.mrb[0].mxu0
  %v484 = vadd.f32 %v311, %v483
  %v485 = vpop.f32.mrb[0].mxu0
  %v486 = vpop.f32.mrb[0].mxu0
  %v487 = vadd.f32 %v311, %v486
  %v488 = vpop.f32.mrb[0].mxu0
  %489 = vmatprep.mubr.bf16.mxu0 %v271
  %490 = vmatmul.mubr.bf16.gmra.mrb[0].mxu0 %v270
  %v491 = vpop.f32.mrb[0].mxu0
  %v492 = vadd.f32 %v311, %v491
  %v493 = vpop.f32.mrb[0].mxu0
  %v494 = vpop.f32.mrb[0].mxu0
  %v495 = vadd.f32 %v311, %v494
  %v496 = vpop.f32.mrb[0].mxu0
  %497 = vmatprep.mubr.bf16.mxu0 %v273
  %498 = vmatmul.mubr.bf16.gmra.mrb[0].mxu0 %v272
  %v499 = vpop.f32.mrb[0].mxu0
  %v500 = vadd.f32 %v311, %v499
  %v501 = vpop.f32.mrb[0].mxu0
  %v502 = vpop.f32.mrb[0].mxu0
  %v503 = vadd.f32 %v311, %v502
  %v504 = vpop.f32.mrb[0].mxu0
  %505 = vdwg.mxu0
  %v506 = vmax.f32 %v444, 0.0
  %v507 = vmax.f32 %v447, 0.0
  %v508 = vmax.f32 %v452, 0.0
  %v509 = vmax.f32 %v455, 0.0
  %v510 = vmax.f32 %v460, 0.0
  %v511 = vmax.f32 %v463, 0.0
  %v512 = vmax.f32 %v468, 0.0
  %v513 = vmax.f32 %v471, 0.0
  %v514 = vmax.f32 %v476, 0.0
  %v515 = vmax.f32 %v479, 0.0
  %v516 = vmax.f32 %v484, 0.0
  %v517 = vmax.f32 %v487, 0.0
  %v518 = vmax.f32 %v492, 0.0
  %v519 = vmax.f32 %v495, 0.0
  %v520 = vmax.f32 %v500, 0.0
  %v521 = vmax.f32 %v503, 0.0
  %v522 = vld [vmem:[%s5] sm:$0x1]
  %v524 = vlaneseq
  %v525 = vshrl.u32 %v524, 7
  %v526 = vsub.s32 0, %v525
  %v527 = vrot.slane %v522, %v526
  %v529 = vmul.f32 %v506, %v527
  %v530 = vmul.f32 %v507, %v527
  %v531 = vmul.f32 %v508, %v527
  %v532 = vmul.f32 %v509, %v527
  %v533 = vmul.f32 %v510, %v527
  %v534 = vmul.f32 %v511, %v527
  %v535 = vmul.f32 %v512, %v527
  %v536 = vmul.f32 %v513, %v527
  %v537 = vmul.f32 %v514, %v527
  %v538 = vmul.f32 %v515, %v527
  %v539 = vmul.f32 %v516, %v527
  %v540 = vmul.f32 %v517, %v527
  %v541 = vmul.f32 %v518, %v527
  %v542 = vmul.f32 %v519, %v527
  %v543 = vmul.f32 %v520, %v527
  %v544 = vmul.f32 %v521, %v527
  %545 = vadd.xlane.f32.xlu0 %v529
  %v546 = vpop.xlane.xlu0 %545
  %547 = vadd.xlane.f32.xlu0 %v530
  %v548 = vpop.xlane.xlu0 %547
  %549 = vadd.xlane.f32.xlu0 %v531
  %v550 = vpop.xlane.xlu0 %549
  %551 = vadd.xlane.f32.xlu0 %v532
  %v552 = vpop.xlane.xlu0 %551
  %553 = vadd.xlane.f32.xlu0 %v533
  %v554 = vpop.xlane.xlu0 %553
  %555 = vadd.xlane.f32.xlu0 %v534
  %v556 = vpop.xlane.xlu0 %555
  %557 = vadd.xlane.f32.xlu0 %v535
  %v558 = vpop.xlane.xlu0 %557
  %559 = vadd.xlane.f32.xlu0 %v536
  %v560 = vpop.xlane.xlu0 %559
  %561 = vadd.xlane.f32.xlu0 %v537
  %v562 = vpop.xlane.xlu0 %561
  %563 = vadd.xlane.f32.xlu0 %v538
  %v564 = vpop.xlane.xlu0 %563
  %565 = vadd.xlane.f32.xlu0 %v539
  %v566 = vpop.xlane.xlu0 %565
  %567 = vadd.xlane.f32.xlu0 %v540
  %v568 = vpop.xlane.xlu0 %567
  %569 = vadd.xlane.f32.xlu0 %v541
  %v570 = vpop.xlane.xlu0 %569
  %571 = vadd.xlane.f32.xlu0 %v542
  %v572 = vpop.xlane.xlu0 %571
  %573 = vadd.xlane.f32.xlu0 %v543
  %v574 = vpop.xlane.xlu0 %573
  %575 = vadd.xlane.f32.xlu0 %v544
  %v576 = vpop.xlane.xlu0 %575
  %s577 = sld [smem:[#allocation2]]
  %v578 = vstv %s577
  %v579 = vadd.f32 %v546, %v578
  %v580 = vadd.f32 %v548, %v578
  %v581 = vadd.f32 %v550, %v578
  %v582 = vadd.f32 %v552, %v578
  %v583 = vadd.f32 %v554, %v578
  %v584 = vadd.f32 %v556, %v578
  %v585 = vadd.f32 %v558, %v578
  %v586 = vadd.f32 %v560, %v578
  %v587 = vadd.f32 %v562, %v578
  %v588 = vadd.f32 %v564, %v578
  %v589 = vadd.f32 %v566, %v578
  %v590 = vadd.f32 %v568, %v578
  %v591 = vadd.f32 %v570, %v578
  %v592 = vadd.f32 %v572, %v578
  %v593 = vadd.f32 %v574, %v578
  %v594 = vadd.f32 %v576, %v578
  %v611 = vlaneseq
  %v612 = vand.u32 %v611, 127
  %v613 = vlaneseq
  %v614 = vshrl.u32 %v613, 7
  %v615 = vsub.s32 %v612, %v614
  %v616 = vrot.slane %v579, %v615
  %v617 = vadd.s32 %v612, 4294967288
  %v618 = vlaneseq
  %v619 = vshrl.u32 %v618, 7
  %v620 = vsub.s32 %v617, %v619
  %v621 = vrot.slane %v580, %v620
  %vm622 = vcmask 130112
  %v623 = vsel %vm622, %v621, %v616
  %v624 = vadd.s32 %v612, 4294967280
  %v625 = vlaneseq
  %v626 = vshrl.u32 %v625, 7
  %v627 = vsub.s32 %v624, %v626
  %v628 = vrot.slane %v581, %v627
  %vm629 = vcmask 195712
  %v630 = vsel %vm629, %v628, %v623
  %v631 = vadd.s32 %v612, 4294967272
  %v632 = vlaneseq
  %v633 = vshrl.u32 %v632, 7
  %v634 = vsub.s32 %v631, %v633
  %v635 = vrot.slane %v582, %v634
  %vm636 = vcmask 261312
  %v637 = vsel %vm636, %v635, %v630
  %v638 = vadd.s32 %v612, 4294967264
  %v639 = vlaneseq
  %v640 = vshrl.u32 %v639, 7
  %v641 = vsub.s32 %v638, %v640
  %v642 = vrot.slane %v583, %v641
  %vm643 = vcmask 326912
  %v644 = vsel %vm643, %v642, %v637
  %v645 = vadd.s32 %v612, 4294967256
  %v646 = vlaneseq
  %v647 = vshrl.u32 %v646, 7
  %v648 = vsub.s32 %v645, %v647
  %v649 = vrot.slane %v584, %v648
  %vm650 = vcmask 392512
  %v651 = vsel %vm650, %v649, %v644
  %v652 = vadd.s32 %v612, 4294967248
  %v653 = vlaneseq
  %v654 = vshrl.u32 %v653, 7
  %v655 = vsub.s32 %v652, %v654
  %v656 = vrot.slane %v585, %v655
  %vm657 = vcmask 458112
  %v658 = vsel %vm657, %v656, %v651
  %v659 = vadd.s32 %v612, 4294967240
  %v660 = vlaneseq
  %v661 = vshrl.u32 %v660, 7
  %v662 = vsub.s32 %v659, %v661
  %v663 = vrot.slane %v586, %v662
  %vm664 = vcmask 523712
  %v665 = vsel %vm664, %v663, %v658
  %v666 = vadd.s32 %v612, 4294967232
  %v667 = vlaneseq
  %v668 = vshrl.u32 %v667, 7
  %v669 = vsub.s32 %v666, %v668
  %v670 = vrot.slane %v587, %v669
  %vm671 = vcmask 589312
  %v672 = vsel %vm671, %v670, %v665
  %v673 = vadd.s32 %v612, 4294967224
  %v674 = vlaneseq
  %v675 = vshrl.u32 %v674, 7
  %v676 = vsub.s32 %v673, %v675
  %v677 = vrot.slane %v588, %v676
  %vm678 = vcmask 654912
  %v679 = vsel %vm678, %v677, %v672
  %v680 = vadd.s32 %v612, 4294967216
  %v681 = vlaneseq
  %v682 = vshrl.u32 %v681, 7
  %v683 = vsub.s32 %v680, %v682
  %v684 = vrot.slane %v589, %v683
  %vm685 = vcmask 720512
  %v686 = vsel %vm685, %v684, %v679
  %v687 = vadd.s32 %v612, 4294967208
  %v688 = vlaneseq
  %v689 = vshrl.u32 %v688, 7
  %v690 = vsub.s32 %v687, %v689
  %v691 = vrot.slane %v590, %v690
  %vm692 = vcmask 786112
  %v693 = vsel %vm692, %v691, %v686
  %v694 = vadd.s32 %v612, 4294967200
  %v695 = vlaneseq
  %v696 = vshrl.u32 %v695, 7
  %v697 = vsub.s32 %v694, %v696
  %v698 = vrot.slane %v591, %v697
  %vm699 = vcmask 851712
  %v700 = vsel %vm699, %v698, %v693
  %v701 = vadd.s32 %v612, 4294967192
  %v702 = vlaneseq
  %v703 = vshrl.u32 %v702, 7
  %v704 = vsub.s32 %v701, %v703
  %v705 = vrot.slane %v592, %v704
  %vm706 = vcmask 917312
  %v707 = vsel %vm706, %v705, %v700
  %v708 = vadd.s32 %v612, 4294967184
  %v709 = vlaneseq
  %v710 = vshrl.u32 %v709, 7
  %v711 = vsub.s32 %v708, %v710
  %v712 = vrot.slane %v593, %v711
  %vm713 = vcmask 982912
  %v714 = vsel %vm713, %v712, %v707
  %v715 = vadd.s32 %v612, 4294967176
  %v716 = vlaneseq
  %v717 = vshrl.u32 %v716, 7
  %v718 = vsub.s32 %v715, %v717
  %v719 = vrot.slane %v594, %v718
  %vm720 = vcmask 1048512
  %v721 = vsel %vm720, %v719, %v714
  %723 = vst [vmem:[%s7] sm:$0x1] %v721
  // Predicated region
  $region30: #{_mlp_forward_impl.1} parent=0 // pred_check
    _
  $region31: #{_mlp_forward_impl.1} parent=0 // pred_check_branch
    %725 = sbr.rel (0) target = $region33
  $region32: #{_mlp_forward_impl.1} parent=0 // pred_region
    _
  $region33: #{_mlp_forward_impl.1} parent=0 // pred_fallthru
    _
  // Predicated region
  $region34: #{_mlp_forward_impl.1} parent=0 // pred_check
    _
  $region35: #{_mlp_forward_impl.1} parent=0 // pred_check_branch
    %727 = sbr.rel (0) target = $region37
  $region36: #{_mlp_forward_impl.1} parent=0 // pred_region
    _
  $region37: #{_mlp_forward_impl.1} parent=0 // pred_fallthru
    _

</llo_original>
